<compile_context>
chip_gen: v7x
topology: tpu7x:2x2x1
jax: 0.10.0
libtpu: 0.0.40
codegen_flags: <defaults>
</compile_context>

<pallas_src>
import jax
import jax.numpy as jnp
from jax.experimental import pallas as pl
from jax.experimental.pallas import tpu as pltpu

# ----------------------------- demo configuration ---------------------------
B = 8            # batch
D_IN = 32        # input feature dim (stand-in for e.g. 121 / 69 / 248)
HID = 64         # hidden width of each ANN branch
OUT_DIM = 32     # per-branch feature dim (convnet.out_dim)
N_CONV = 2       # len(self.convnets)  (two incremental tasks so far)
FEATURE_DIM = OUT_DIM * N_CONV
NB_CLASSES = 10  # total classes seen -> fc out_features
NEW_TASK = 5     # most recent task size
AUX_OUT = NEW_TASK + 1  # aux_fc out_features = new_task_size + 1

_LANE = 128
_SUBLANE = 8


def _round_up(n, m):
    return ((n + m - 1) // m) * m


# ------------------------------- kernel -------------------------------------
def dernet_kernel(
    x_ref,      # (TB, D_IN)
    w1_ref,     # (D_IN, H_PAD)       fused layer-1 weights (all branches)
    b1_ref,     # (1, H_PAD)          f32
    w2_ref,     # (H_PAD, FEAT_PAD)   block-diagonal layer-2 weights
    b2_ref,     # (1, FEAT_PAD)       f32
    wo_ref,     # (FEAT_PAD, OUT_PAD) fused [identity | fc | aux_fc | 0] head
    bo_ref,     # (1, OUT_PAD)        f32
    out_ref,    # (TB, OUT_PAD)  out: [features | logits | aux_logits | 0-pad]
):
    x = x_ref[...]

    # Layer 1, all branches at once: one 128-wide MXU push + lane-dense bias/ReLU.
    h = jnp.dot(x, w1_ref[...], preferred_element_type=jnp.float32)
    h = jnp.maximum(h + b1_ref[...], 0.0)

    # Layer 2, block-diagonal: features come out already concatenated
    # (branch i only sees h[:, i*HID:(i+1)*HID]; other rows are zero).
    f = jnp.dot(h.astype(w2_ref.dtype), w2_ref[...],
                preferred_element_type=jnp.float32)
    f = jnp.maximum(f + b2_ref[...], 0.0)

    # Fused output projection: a single lane-dense matmul produces the packed
    # slab [features (identity block) | fc logits | aux_fc logits | 0-pad],
    # so there is exactly ONE output DMA stream and no zero-heavy second slab.
    o = jnp.dot(f.astype(wo_ref.dtype), wo_ref[...],
                preferred_element_type=jnp.float32)
    out_ref[...] = o + bo_ref[...]


# --------------------------- one-time weight fusion --------------------------
def fuse_params(params, param_dtype=jnp.float32):
    """Build the fused / padded weight layout consumed by the kernel.

    Call this ONCE per task (whenever the parameters change), not per forward:
    the transpose + block-diagonal construction is wrapper-side work that must
    stay out of the latency path.
    """
    w1, b1, w2, b2, fcw, fcb, auxw, auxb = params
    n_conv, d_in, hid = w1.shape
    out_dim = w2.shape[2]
    feature_dim = n_conv * out_dim
    nb_classes = fcw.shape[1]
    aux_out = auxw.shape[1]

    h_all = n_conv * hid
    h_pad = _round_up(h_all, _LANE)
    feat_pad = _round_up(feature_dim, _LANE)
    out_cols = feature_dim + nb_classes + aux_out
    out_pad = _round_up(out_cols, _LANE)

    # Layer 1: concat branch weights along the output axis -> one matmul.
    w1_all = jnp.zeros((d_in, h_pad), jnp.float32)
    w1_all = w1_all.at[:, :h_all].set(
        jnp.transpose(w1, (1, 0, 2)).reshape(d_in, h_all))
    b1_all = jnp.zeros((1, h_pad), jnp.float32).at[0, :h_all].set(
        b1.reshape(h_all))

    # Layer 2: block-diagonal weight -> concatenated features, no concatenate.
    w2_all = jnp.zeros((h_pad, feat_pad), jnp.float32)
    for i in range(n_conv):
        w2_all = w2_all.at[i * hid:(i + 1) * hid,
                           i * out_dim:(i + 1) * out_dim].set(w2[i])
    b2_all = jnp.zeros((1, feat_pad), jnp.float32).at[0, :feature_dim].set(
        b2.reshape(feature_dim))

    # Fused output projection (single packed slab):
    #   cols [0:feature_dim]                      identity  -> features
    #   cols [feature_dim : +nb_classes]          fc weight -> logits
    #   cols [feature_dim+nb_classes : +aux_out]  aux_fc    -> aux_logits
    wo = jnp.zeros((feat_pad, out_pad), jnp.float32)
    wo = wo.at[:feature_dim, :feature_dim].set(
        jnp.eye(feature_dim, dtype=jnp.float32))
    wo = wo.at[:feature_dim, feature_dim:feature_dim + nb_classes].set(fcw)
    wo = wo.at[feature_dim - out_dim:feature_dim,
               feature_dim + nb_classes:feature_dim + nb_classes + aux_out
               ].set(auxw)
    bo = jnp.zeros((1, out_pad), jnp.float32)
    bo = bo.at[0, feature_dim:feature_dim + nb_classes].set(fcb)
    bo = bo.at[0, feature_dim + nb_classes:
               feature_dim + nb_classes + aux_out].set(auxb)

    dims = dict(d_in=d_in, h_pad=h_pad, feat_pad=feat_pad, out_pad=out_pad,
                feature_dim=feature_dim, out_dim=out_dim,
                nb_classes=nb_classes, aux_out=aux_out)
    # Weights in param_dtype (bf16 halves VMEM/HBM traffic and is MXU-native);
    # biases stay f32 (added to f32 accumulators on the VPU).
    fused = (w1_all.astype(param_dtype), b1_all,
             w2_all.astype(param_dtype), b2_all,
             wo.astype(param_dtype), bo)
    return fused, dims


# ------------------------------- forward ------------------------------------
def dernet_forward(x, fused, dims, *, block_b=1024):
    w1_all, b1_all, w2_all, b2_all, wo_all, bo_all = fused

    b, d_in = x.shape
    assert d_in == dims["d_in"], (d_in, dims["d_in"])
    h_pad, feat_pad, out_pad = dims["h_pad"], dims["feat_pad"], dims["out_pad"]

    # Batch tiling:
    #  * tb is always a multiple of 8 (sublane constraint) and capped at 1024
    #    so double-buffered tiles stay well under v5e's 16 MiB scoped default.
    #  * tb is also capped at ~half the batch so the grid keeps >= 2 steps when
    #    the batch allows it -> the "parallel" axis feeds both v7x TensorCores.
    b8 = _round_up(b, _SUBLANE)
    half = _round_up((b8 + 1) // 2, _SUBLANE)
    tb = max(_SUBLANE, min(_round_up(block_b, _SUBLANE), half, 1024))
    b_pad = _round_up(b, tb)
    if b_pad != b:
        x = jnp.pad(x, ((0, b_pad - b), (0, 0)))
    x = x.astype(w1_all.dtype)
    grid = (b_pad // tb,)

    out_p = pl.pallas_call(
        dernet_kernel,
        out_shape=jax.ShapeDtypeStruct((b_pad, out_pad), jnp.float32),
        grid_spec=pltpu.PrefetchScalarGridSpec(
            num_scalar_prefetch=0,
            grid=grid,
            in_specs=[
                pl.BlockSpec((tb, d_in), lambda i: (i, 0)),        # x: batch-tiled
                pl.BlockSpec((d_in, h_pad), lambda i: (0, 0)),     # weights stay
                pl.BlockSpec((1, h_pad), lambda i: (0, 0)),        # VMEM-resident
                pl.BlockSpec((h_pad, feat_pad), lambda i: (0, 0)),
                pl.BlockSpec((1, feat_pad), lambda i: (0, 0)),
                pl.BlockSpec((feat_pad, out_pad), lambda i: (0, 0)),
                pl.BlockSpec((1, out_pad), lambda i: (0, 0)),
            ],
            out_specs=pl.BlockSpec((tb, out_pad), lambda i: (i, 0)),
        ),
        compiler_params=pltpu.CompilerParams(
            dimension_semantics=("parallel",)),
    )(x, w1_all, b1_all, w2_all, b2_all, wo_all, bo_all)

    feature_dim = dims["feature_dim"]
    nb_classes = dims["nb_classes"]
    aux_out = dims["aux_out"]
    features = out_p[:b, :feature_dim]
    logits = out_p[:b, feature_dim:feature_dim + nb_classes]
    aux_logits = out_p[:b, feature_dim + nb_classes:
                       feature_dim + nb_classes + aux_out]
    return {"logits": logits, "aux_logits": aux_logits, "features": features}


# --------------------------- deterministic init ------------------------------
def init_params(key):
    ks = jax.random.split(key, 8)
    scale = 0.05
    w1 = scale * jax.random.normal(ks[0], (N_CONV, D_IN, HID), jnp.float32)
    b1 = scale * jax.random.normal(ks[1], (N_CONV, HID), jnp.float32)
    w2 = scale * jax.random.normal(ks[2], (N_CONV, HID, OUT_DIM), jnp.float32)
    b2 = scale * jax.random.normal(ks[3], (N_CONV, OUT_DIM), jnp.float32)
    fcw = scale * jax.random.normal(ks[4], (FEATURE_DIM, NB_CLASSES), jnp.float32)
    fcb = scale * jax.random.normal(ks[5], (NB_CLASSES,), jnp.float32)
    auxw = scale * jax.random.normal(ks[6], (OUT_DIM, AUX_OUT), jnp.float32)
    auxb = scale * jax.random.normal(ks[7], (AUX_OUT,), jnp.float32)
    return (w1, b1, w2, b2, fcw, fcb, auxw, auxb)


# ------------------------------ reference -----------------------------------
def dernet_ref(x, params):
    (w1, b1, w2, b2, fcw, fcb, auxw, auxb) = params
    n_conv = w1.shape[0]
    out_dim = w2.shape[2]
    feats = []
    for i in range(n_conv):
        h = jnp.maximum(x @ w1[i] + b1[i], 0.0)
        f = jnp.maximum(h @ w2[i] + b2[i], 0.0)
        feats.append(f)
    features = jnp.concatenate(feats, axis=1)
    logits = features @ fcw + fcb
    aux_logits = features[:, -out_dim:] @ auxw + auxb
    return {"logits": logits, "aux_logits": aux_logits, "features": features}


def _check(out, ref, *, atol, rtol):
    for k in ("logits", "aux_logits", "features"):
        assert out[k].shape == ref[k].shape, (k, out[k].shape, ref[k].shape)
        assert jnp.allclose(out[k], ref[k], atol=atol, rtol=rtol), k


if __name__ == "__main__":
    key = jax.random.PRNGKey(0)
    kx, kp, kx2 = jax.random.split(key, 3)
    params = init_params(kp)

    # Weight fusion hoisted out of the forward path: done once per task.
    fused_f32, dims_f32 = fuse_params(params, jnp.float32)
    fused_bf16, dims_bf16 = fuse_params(params, jnp.bfloat16)

    # f32 path, single tile (grid=(1,)), tight tolerance.
    x = jax.random.normal(kx, (B, D_IN), jnp.float32)
    out = dernet_forward(x, fused_f32, dims_f32)
    jax.block_until_ready(out)
    _check(out, dernet_ref(x, params), atol=1e-4, rtol=1e-4)

    # bf16 MXU path (same shapes), relaxed tolerance for the expected rounding.
    out_b = dernet_forward(x, fused_bf16, dims_bf16)
    jax.block_until_ready(out_b)
    _check(out_b, dernet_ref(x, params), atol=3e-2, rtol=3e-2)

    # Multi-tile path with batch padding (batch=40, block_b=16 -> tb=16, grid=(3,)).
    x2 = jax.random.normal(kx2, (40, D_IN), jnp.float32)
    out2 = dernet_forward(x2, fused_bf16, dims_bf16, block_b=16)
    jax.block_until_ready(out2)
    _check(out2, dernet_ref(x2, params), atol=3e-2, rtol=3e-2)

    # Default big-tile config also exercises the grid>=2 split (batch=40 -> tb=24, grid=(2,)).
    out3 = dernet_forward(x2, fused_f32, dims_f32)
    jax.block_until_ready(out3)
    _check(out3, dernet_ref(x2, params), atol=1e-4, rtol=1e-4)

    print("KERNEL_OK")
</pallas_src>

<mosaic_0001>
module attributes {stable_mosaic.version = 11 : i64} {
  func.func @dernet_kernel(%arg0: i32, %arg1: memref<8x32xf32, #tpu.memory_space<vmem>>, %arg2: memref<32x128xf32, #tpu.memory_space<vmem>>, %arg3: memref<1x128xf32, #tpu.memory_space<vmem>>, %arg4: memref<128x128xf32, #tpu.memory_space<vmem>>, %arg5: memref<1x128xf32, #tpu.memory_space<vmem>>, %arg6: memref<128x128xf32, #tpu.memory_space<vmem>>, %arg7: memref<1x128xf32, #tpu.memory_space<vmem>>, %arg8: memref<8x128xf32, #tpu.memory_space<vmem>>) attributes {dimension_semantics = [#tpu.dimension_semantics<parallel>], iteration_bounds = array<i64: 1>, scalar_prefetch = 0 : i64, scratch_operands = 0 : i64, tpu.core_type = #tpu.core_type<tc>, window_params = [{transform_indices = @transform_0, window_bounds = array<i64: 8, 32>}, {pipeline_mode = #tpu.pipeline_mode<synchronous>, transform_indices = @transform_1, window_bounds = array<i64: 32, 128>}, {pipeline_mode = #tpu.pipeline_mode<synchronous>, transform_indices = @transform_2, window_bounds = array<i64: 1, 128>}, {pipeline_mode = #tpu.pipeline_mode<synchronous>, transform_indices = @transform_3, window_bounds = array<i64: 128, 128>}, {pipeline_mode = #tpu.pipeline_mode<synchronous>, transform_indices = @transform_4, window_bounds = array<i64: 1, 128>}, {pipeline_mode = #tpu.pipeline_mode<synchronous>, transform_indices = @transform_5, window_bounds = array<i64: 128, 128>}, {pipeline_mode = #tpu.pipeline_mode<synchronous>, transform_indices = @transform_6, window_bounds = array<i64: 1, 128>}, {transform_indices = @transform_7, window_bounds = array<i64: 8, 128>}]} {
    %c0 = arith.constant 0 : index
    %c0_0 = arith.constant 0 : index
    %0 = vector.load %arg1[%c0, %c0_0] : memref<8x32xf32, #tpu.memory_space<vmem>>, vector<8x32xf32>
    %c0_1 = arith.constant 0 : index
    %c0_2 = arith.constant 0 : index
    %1 = vector.load %arg2[%c0_1, %c0_2] : memref<32x128xf32, #tpu.memory_space<vmem>>, vector<32x128xf32>
    %cst = arith.constant dense<0.000000e+00> : vector<8x128xf32>
    %2 = tpu.matmul %0, %1, %cst {dimension_numbers = #tpu.dot_dimension_numbers<[1], [0], [0], [1], [0, 0, 1, 1], [], []>} : vector<8x32xf32>, vector<32x128xf32>, vector<8x128xf32> -> vector<8x128xf32>
    %c0_3 = arith.constant 0 : index
    %c0_4 = arith.constant 0 : index
    %3 = vector.load %arg3[%c0_3, %c0_4] : memref<1x128xf32, #tpu.memory_space<vmem>>, vector<1x128xf32>
    %4 = vector.broadcast %3 : vector<1x128xf32> to vector<8x128xf32>
    %5 = arith.addf %2, %4 : vector<8x128xf32>
    %cst_5 = arith.constant 0.000000e+00 : f32
    %6 = vector.broadcast %cst_5 : f32 to vector<8x128xf32>
    %7 = arith.maximumf %5, %6 : vector<8x128xf32>
    %c0_6 = arith.constant 0 : index
    %c0_7 = arith.constant 0 : index
    %8 = vector.load %arg4[%c0_6, %c0_7] : memref<128x128xf32, #tpu.memory_space<vmem>>, vector<128x128xf32>
    %cst_8 = arith.constant dense<0.000000e+00> : vector<8x128xf32>
    %9 = tpu.matmul %7, %8, %cst_8 {dimension_numbers = #tpu.dot_dimension_numbers<[1], [0], [0], [1], [0, 0, 1, 1], [], []>} : vector<8x128xf32>, vector<128x128xf32>, vector<8x128xf32> -> vector<8x128xf32>
    %c0_9 = arith.constant 0 : index
    %c0_10 = arith.constant 0 : index
    %10 = vector.load %arg5[%c0_9, %c0_10] : memref<1x128xf32, #tpu.memory_space<vmem>>, vector<1x128xf32>
    %11 = vector.broadcast %10 : vector<1x128xf32> to vector<8x128xf32>
    %12 = arith.addf %9, %11 : vector<8x128xf32>
    %cst_11 = arith.constant 0.000000e+00 : f32
    %13 = vector.broadcast %cst_11 : f32 to vector<8x128xf32>
    %14 = arith.maximumf %12, %13 : vector<8x128xf32>
    %c0_12 = arith.constant 0 : index
    %c0_13 = arith.constant 0 : index
    %15 = vector.load %arg6[%c0_12, %c0_13] : memref<128x128xf32, #tpu.memory_space<vmem>>, vector<128x128xf32>
    %cst_14 = arith.constant dense<0.000000e+00> : vector<8x128xf32>
    %16 = tpu.matmul %14, %15, %cst_14 {dimension_numbers = #tpu.dot_dimension_numbers<[1], [0], [0], [1], [0, 0, 1, 1], [], []>} : vector<8x128xf32>, vector<128x128xf32>, vector<8x128xf32> -> vector<8x128xf32>
    %c0_15 = arith.constant 0 : index
    %c0_16 = arith.constant 0 : index
    %17 = vector.load %arg7[%c0_15, %c0_16] : memref<1x128xf32, #tpu.memory_space<vmem>>, vector<1x128xf32>
    %18 = vector.broadcast %17 : vector<1x128xf32> to vector<8x128xf32>
    %19 = arith.addf %16, %18 : vector<8x128xf32>
    %c0_17 = arith.constant 0 : index
    %c0_18 = arith.constant 0 : index
    %20 = vector.load %arg8[%c0_17, %c0_18] : memref<8x128xf32, #tpu.memory_space<vmem>>, vector<8x128xf32>
    tpu.vector_store %arg8[%c0_17, %c0_18], %19 {strides = array<i32>} : memref<8x128xf32, #tpu.memory_space<vmem>>, vector<8x128xf32>,
    return
  }
  func.func @transform_0(%arg0: i32) -> (i32, i32) {
    %c0_i32 = arith.constant 0 : i32
    %c0_i32_0 = arith.constant 0 : i32
    return %arg0, %c0_i32 : i32, i32
  }
  func.func @transform_1(%arg0: i32) -> (i32, i32) {
    %c0_i32 = arith.constant 0 : i32
    %c0_i32_0 = arith.constant 0 : i32
    %c0_i32_1 = arith.constant 0 : i32
    return %c0_i32, %c0_i32_0 : i32, i32
  }
  func.func @transform_2(%arg0: i32) -> (i32, i32) {
    %c0_i32 = arith.constant 0 : i32
    %c0_i32_0 = arith.constant 0 : i32
    %c0_i32_1 = arith.constant 0 : i32
    return %c0_i32, %c0_i32_0 : i32, i32
  }
  func.func @transform_3(%arg0: i32) -> (i32, i32) {
    %c0_i32 = arith.constant 0 : i32
    %c0_i32_0 = arith.constant 0 : i32
    %c0_i32_1 = arith.constant 0 : i32
    return %c0_i32, %c0_i32_0 : i32, i32
  }
  func.func @transform_4(%arg0: i32) -> (i32, i32) {
    %c0_i32 = arith.constant 0 : i32
    %c0_i32_0 = arith.constant 0 : i32
    %c0_i32_1 = arith.constant 0 : i32
    return %c0_i32, %c0_i32_0 : i32, i32
  }
  func.func @transform_5(%arg0: i32) -> (i32, i32) {
    %c0_i32 = arith.constant 0 : i32
    %c0_i32_0 = arith.constant 0 : i32
    %c0_i32_1 = arith.constant 0 : i32
    return %c0_i32, %c0_i32_0 : i32, i32
  }
  func.func @transform_6(%arg0: i32) -> (i32, i32) {
    %c0_i32 = arith.constant 0 : i32
    %c0_i32_0 = arith.constant 0 : i32
    %c0_i32_1 = arith.constant 0 : i32
    return %c0_i32, %c0_i32_0 : i32, i32
  }
  func.func @transform_7(%arg0: i32) -> (i32, i32) {
    %c0_i32 = arith.constant 0 : i32
    %c0_i32_0 = arith.constant 0 : i32
    return %arg0, %c0_i32 : i32, i32
  }
}

</mosaic_0001>

<llo_original>
// kernel: tpu_custom_call.1
$region0: #{tpu_custom_call.1}
  #allocation0 [shape = 'u32[]', space=smem, size = 0x4, offset = 0x4, fixed_abs, tag = 'smem constant byte address 0x4 - core index']
  #allocation1 [shape = 'u32[144,128]{1,0:T(1,128)}', space=vmem, size = 0x12000, scoped, tag = 'internal scratch']
  %s0 = inlined_call_operand.hbm [shape: f32[8,32], index: 0, kind: input, shape index: {}]
  %s1 = inlined_call_operand.hbm [shape: f32[32,128], index: 1, kind: input, shape index: {}]
  %s2 = inlined_call_operand.vmem [shape: f32[1,128], index: 2, kind: input, shape index: {}]
  %s3 = inlined_call_operand.hbm [shape: f32[128,128], index: 3, kind: input, shape index: {}]
  %s4 = inlined_call_operand.vmem [shape: f32[1,128], index: 4, kind: input, shape index: {}]
  %s5 = inlined_call_operand.hbm [shape: f32[128,128], index: 5, kind: input, shape index: {}]
  %s6 = inlined_call_operand.vmem [shape: f32[1,128], index: 6, kind: input, shape index: {}]
  %s7 = inlined_call_operand.hbm [shape: f32[8,128], index: 7, kind: output, shape index: {}]
  %s8 = sld [smem:[#allocation0]]
  $region54: #{tpu_custom_call.1} parent=0
    _
  %s10 = ssub.s32 1, %s8
  %s11 = scalar_select 0, %s10, %s8
  $region1: #{tpu_custom_call.1} parent=0
    #allocation2 [shape = 'u8[4096]{0}', space=vmem, size = 0x1000, scoped, tag = 'input window, operand 0, single buffered']
    #allocation3 [shape = 's32[1]{0}', space=sflag, size = 0x4, scoped, tag = 'scoped memory for tpu_custom_call.1']
    #allocation4 [shape = 's32[1]{0}', space=sflag, size = 0x4, scoped, tag = 'scoped memory for tpu_custom_call.1']
    #allocation5 [shape = 'u8[16384]{0}', space=vmem, size = 0x4000, scoped, tag = 'input window, operand 1, single buffered']
    #allocation6 [shape = 's32[1]{0}', space=sflag, size = 0x4, scoped, tag = 'scoped memory for tpu_custom_call.1']
    #allocation7 [shape = 'u8[65536]{0}', space=vmem, size = 0x10000, scoped, tag = 'input window, operand 3, single buffered']
    #allocation8 [shape = 'u8[65536]{0}', space=vmem, size = 0x10000, scoped, tag = 'input window, operand 5, single buffered']
    #allocation9 [shape = 's32[1]{0}', space=sflag, size = 0x4, scoped, tag = 'scoped memory for tpu_custom_call.1']
    #allocation10 [shape = 'u8[4096]{0}', space=vmem, size = 0x1000, scoped, tag = 'output window, operand 0, single buffered']
    %12 = vsyncpa [#allocation3], 0
    %13 = vsyncpa [#allocation6], 0
    %14 = vsyncpa [#allocation9], 0
    %15 = vsyncpa [#allocation4], 0
    // Predicated region
    $region2: #{tpu_custom_call.1} parent=1 // pred_check
      _
    $region3: #{tpu_custom_call.1} parent=1 // pred_check_branch
      %17 = sbr.rel (0) target = $region5
    $region4: #{tpu_custom_call.1} parent=1 // pred_region
      %s19 = ssub.s32 128, 128
      %20 = vsyncadd [#allocation3], %s19
      %s22 = sshll.u32 [#allocation2], 4
      %s23 = int_to_ptr.vmem [resolvable:$true] %s22
      %25 = dma.hbm_to_vmem [thread:$0]  %s0, 128, %s23, [#allocation3]
    $region5: #{tpu_custom_call.1} parent=1 // pred_fallthru
      _
    // Predicated region
    $region6: #{tpu_custom_call.1} parent=1 // pred_check
      _
    $region7: #{tpu_custom_call.1} parent=1 // pred_check_branch
      %27 = sbr.rel (0) target = $region9
    $region8: #{tpu_custom_call.1} parent=1 // pred_region
      %s29 = ssub.s32 512, 512
      %30 = vsyncadd [#allocation6], %s29
      %s31 = sshll.u32 [#allocation5], 4
      %s32 = int_to_ptr.vmem [resolvable:$true] %s31
      %37 = dma.hbm_to_vmem [thread:$0]  %s1, 512, %s32, [#allocation6], 128, 128, 8
    $region9: #{tpu_custom_call.1} parent=1 // pred_fallthru
      _
    // Predicated region
    $region10: #{tpu_custom_call.1} parent=1 // pred_check
      _
    $region11: #{tpu_custom_call.1} parent=1 // pred_check_branch
      %39 = sbr.rel (0) target = $region13
    $region12: #{tpu_custom_call.1} parent=1 // pred_region
      _
    $region13: #{tpu_custom_call.1} parent=1 // pred_fallthru
      _
    // Predicated region
    $region14: #{tpu_custom_call.1} parent=1 // pred_check
      _
    $region15: #{tpu_custom_call.1} parent=1 // pred_check_branch
      %41 = sbr.rel (0) target = $region17
    $region16: #{tpu_custom_call.1} parent=1 // pred_region
      %s43 = ssub.s32 2048, 2048
      %44 = vsyncadd [#allocation6], %s43
      %s45 = sshll.u32 [#allocation7], 4
      %s46 = int_to_ptr.vmem [resolvable:$true] %s45
      %51 = dma.hbm_to_vmem [thread:$0]  %s3, 2048, %s46, [#allocation6], 128, 128, 8
    $region17: #{tpu_custom_call.1} parent=1 // pred_fallthru
      _
    // Predicated region
    $region18: #{tpu_custom_call.1} parent=1 // pred_check
      _
    $region19: #{tpu_custom_call.1} parent=1 // pred_check_branch
      %53 = sbr.rel (0) target = $region21
    $region20: #{tpu_custom_call.1} parent=1 // pred_region
      _
    $region21: #{tpu_custom_call.1} parent=1 // pred_fallthru
      _
    // Predicated region
    $region22: #{tpu_custom_call.1} parent=1 // pred_check
      _
    $region23: #{tpu_custom_call.1} parent=1 // pred_check_branch
      %55 = sbr.rel (0) target = $region25
    $region24: #{tpu_custom_call.1} parent=1 // pred_region
      %s57 = ssub.s32 2048, 2048
      %58 = vsyncadd [#allocation9], %s57
      %s59 = sshll.u32 [#allocation8], 4
      %s60 = int_to_ptr.vmem [resolvable:$true] %s59
      %65 = dma.hbm_to_vmem [thread:$0]  %s5, 2048, %s60, [#allocation9], 128, 128, 8
    $region25: #{tpu_custom_call.1} parent=1 // pred_fallthru
      _
    // Predicated region
    $region26: #{tpu_custom_call.1} parent=1 // pred_check
      _
    $region27: #{tpu_custom_call.1} parent=1 // pred_check_branch
      %67 = sbr.rel (0) target = $region29
    $region28: #{tpu_custom_call.1} parent=1 // pred_region
      _
    $region29: #{tpu_custom_call.1} parent=1 // pred_fallthru
      _
    // Predicated region
    $region30: #{tpu_custom_call.1} parent=1 // pred_check
      _
    $region31: #{tpu_custom_call.1} parent=1 // pred_check_branch
      %69 = sbr.rel (0) target = $region33
    $region32: #{tpu_custom_call.1} parent=1 // pred_region
      %70 = dma.done [#allocation3], 128
    $region33: #{tpu_custom_call.1} parent=1 // pred_fallthru
      _
    // Predicated region
    $region34: #{tpu_custom_call.1} parent=1 // pred_check
      _
    $region35: #{tpu_custom_call.1} parent=1 // pred_check_branch
      %72 = sbr.rel (0) target = $region37
    $region36: #{tpu_custom_call.1} parent=1 // pred_region
      %73 = dma.done [#allocation6], 512
    $region37: #{tpu_custom_call.1} parent=1 // pred_fallthru
      _
    // Predicated region
    $region38: #{tpu_custom_call.1} parent=1 // pred_check
      _
    $region39: #{tpu_custom_call.1} parent=1 // pred_check_branch
      %75 = sbr.rel (0) target = $region41
    $region40: #{tpu_custom_call.1} parent=1 // pred_region
      %76 = dma.done [#allocation6], 2048
    $region41: #{tpu_custom_call.1} parent=1 // pred_fallthru
      _
    // Predicated region
    $region42: #{tpu_custom_call.1} parent=1 // pred_check
      _
    $region43: #{tpu_custom_call.1} parent=1 // pred_check_branch
      %78 = sbr.rel (0) target = $region45
    $region44: #{tpu_custom_call.1} parent=1 // pred_region
      %79 = dma.done [#allocation9], 2048
    $region45: #{tpu_custom_call.1} parent=1 // pred_fallthru
      _
    %v80 = vld [vmem:[#allocation2] sm:$0xff]
    %v81 = vld [vmem:[#allocation5] sm:$0xff]
    %v82 = vld [vmem:[#allocation5 + $0x8] sm:$0xff]
    %v83 = vld [vmem:[#allocation5 + $0x10] sm:$0xff]
    %v84 = vld [vmem:[#allocation5 + $0x18] sm:$0xff]
    %v85 = vld [vmem:[%s2] sm:$0x1]
    %v87 = vlaneseq
    %v88 = vshrl.u32 %v87, 7
    %v89 = vsub.s32 0, %v88
    %v90 = vrot.slane %v85, %v89
    %vm92 = vcmask 261120
    %v94 = vsel %vm92, %v80, 0
    %96 = vmatprep.subr.mxu0 0.0
    %97 = vmatpush1.msra.mxu0 %v81
    %98 = vmatprep.subr.mxu0 0.0
    %99 = vmatpush1.msra.mxu0 %v82
    %100 = vmatprep.subr.mxu0 0.0
    %101 = vmatpush1.msra.mxu0 %v83
    %102 = vmatprep.subr.mxu0 0.0
    %103 = vmatpush1.msra.mxu0 %v84
    %104 = vmatprep.subr.mxu0 0.0
    %105 = vmatpush1.msra.mxu0 0.0
    %106 = vmatprep.subr.mxu0 0.0
    %107 = vmatpush1.msra.mxu0 0.0
    %108 = vmatprep.subr.mxu0 0.0
    %109 = vmatpush1.msra.mxu0 0.0
    %110 = vmatprep.subr.mxu0 0.0
    %111 = vmatpush1.msra.mxu0 0.0
    %112 = vmatprep.subr.mxu0 0.0
    %113 = vmatpush1.msra.mxu0 0.0
    %114 = vmatprep.subr.mxu0 0.0
    %115 = vmatpush1.msra.mxu0 0.0
    %116 = vmatprep.subr.mxu0 0.0
    %117 = vmatpush1.msra.mxu0 0.0
    %118 = vmatprep.subr.mxu0 0.0
    %119 = vmatpush1.msra.mxu0 0.0
    %120 = vmatprep.subr.mxu0 0.0
    %121 = vmatpush1.msra.mxu0 0.0
    %122 = vmatprep.subr.mxu0 0.0
    %123 = vmatpush1.msra.mxu0 0.0
    %124 = vmatprep.subr.mxu0 0.0
    %125 = vmatpush1.msra.mxu0 0.0
    %126 = vmatprep.subr.mxu0 0.0
    %127 = vmatpush1.msra.mxu0 0.0
    %128 = vmatprep.subr.mxu0 0.0
    %129 = vmatpush1.msra.mxu0 0.0
    %130 = vmatprep.subr.mxu0 0.0
    %131 = vmatpush1.msra.mxu0 0.0
    %132 = vmatprep.subr.mxu0 0.0
    %133 = vmatpush1.msra.mxu0 0.0
    %134 = vmatprep.subr.mxu0 0.0
    %135 = vmatpush1.msra.mxu0 0.0
    %136 = vmatprep.subr.mxu0 0.0
    %137 = vmatpush1.msra.mxu0 0.0
    %138 = vmatprep.subr.mxu0 0.0
    %139 = vmatpush1.msra.mxu0 0.0
    %140 = vmatprep.subr.mxu0 0.0
    %141 = vmatpush1.msra.mxu0 0.0
    %142 = vmatprep.subr.mxu0 0.0
    %143 = vmatpush1.msra.mxu0 0.0
    %144 = vmatprep.subr.mxu0 0.0
    %145 = vmatpush1.msra.mxu0 0.0
    %146 = vmatprep.subr.mxu0 0.0
    %147 = vmatpush1.msra.mxu0 0.0
    %148 = vmatprep.subr.mxu0 0.0
    %149 = vmatpush1.msra.mxu0 0.0
    %150 = vmatprep.subr.mxu0 0.0
    %151 = vmatpush1.msra.mxu0 0.0
    %152 = vmatprep.subr.mxu0 0.0
    %153 = vmatpush1.msra.mxu0 0.0
    %154 = vmatprep.subr.mxu0 0.0
    %155 = vmatpush1.msra.mxu0 0.0
    %156 = vmatprep.subr.mxu0 0.0
    %157 = vmatpush1.msra.mxu0 0.0
    %158 = vmatprep.subr.mxu0 0.0
    %159 = vmatpush1.msra.mxu0 0.0
    %160 = vmatprep.mubr.f32.mxu0 0.0
    %161 = vmatmul.mubr.f32.gmra.mrb[0].mxu0 %v94
    %v162 = vpop.f32.mrb[0].mxu0
    %v163 = vadd.f32 %v90, %v162
    %v164 = vpop.f32.mrb[0].mxu0
    %165 = vdwg.mxu0
    %v166 = vmax.f32 %v163, 0.0
    %v167 = vld [vmem:[#allocation7] sm:$0xff]
    %v168 = vld [vmem:[#allocation7 + $0x8] sm:$0xff]
    %v169 = vld [vmem:[#allocation7 + $0x10] sm:$0xff]
    %v170 = vld [vmem:[#allocation7 + $0x18] sm:$0xff]
    %v171 = vld [vmem:[#allocation7 + $0x20] sm:$0xff]
    %v172 = vld [vmem:[#allocation7 + $0x28] sm:$0xff]
    %v173 = vld [vmem:[#allocation7 + $0x30] sm:$0xff]
    %v174 = vld [vmem:[#allocation7 + $0x38] sm:$0xff]
    %v175 = vld [vmem:[#allocation7 + $0x40] sm:$0xff]
    %v176 = vld [vmem:[#allocation7 + $0x48] sm:$0xff]
    %v177 = vld [vmem:[#allocation7 + $0x50] sm:$0xff]
    %v178 = vld [vmem:[#allocation7 + $0x58] sm:$0xff]
    %v179 = vld [vmem:[#allocation7 + $0x60] sm:$0xff]
    %v180 = vld [vmem:[#allocation7 + $0x68] sm:$0xff]
    %v181 = vld [vmem:[#allocation7 + $0x70] sm:$0xff]
    %v182 = vld [vmem:[#allocation7 + $0x78] sm:$0xff]
    %v183 = vld [vmem:[%s4] sm:$0x1]
    %v185 = vlaneseq
    %v186 = vshrl.u32 %v185, 7
    %v187 = vsub.s32 0, %v186
    %v188 = vrot.slane %v183, %v187
    %190 = vmatprep.subr.mxu0 0.0
    %191 = vmatpush1.msra.mxu0 %v167
    %192 = vmatprep.subr.mxu0 0.0
    %193 = vmatpush1.msra.mxu0 %v168
    %194 = vmatprep.subr.mxu0 0.0
    %195 = vmatpush1.msra.mxu0 %v169
    %196 = vmatprep.subr.mxu0 0.0
    %197 = vmatpush1.msra.mxu0 %v170
    %198 = vmatprep.subr.mxu0 0.0
    %199 = vmatpush1.msra.mxu0 %v171
    %200 = vmatprep.subr.mxu0 0.0
    %201 = vmatpush1.msra.mxu0 %v172
    %202 = vmatprep.subr.mxu0 0.0
    %203 = vmatpush1.msra.mxu0 %v173
    %204 = vmatprep.subr.mxu0 0.0
    %205 = vmatpush1.msra.mxu0 %v174
    %206 = vmatprep.subr.mxu0 0.0
    %207 = vmatpush1.msra.mxu0 %v175
    %208 = vmatprep.subr.mxu0 0.0
    %209 = vmatpush1.msra.mxu0 %v176
    %210 = vmatprep.subr.mxu0 0.0
    %211 = vmatpush1.msra.mxu0 %v177
    %212 = vmatprep.subr.mxu0 0.0
    %213 = vmatpush1.msra.mxu0 %v178
    %214 = vmatprep.subr.mxu0 0.0
    %215 = vmatpush1.msra.mxu0 %v179
    %216 = vmatprep.subr.mxu0 0.0
    %217 = vmatpush1.msra.mxu0 %v180
    %218 = vmatprep.subr.mxu0 0.0
    %219 = vmatpush1.msra.mxu0 %v181
    %220 = vmatprep.subr.mxu0 0.0
    %221 = vmatpush1.msra.mxu0 %v182
    %222 = vmatprep.subr.mxu0 0.0
    %223 = vmatpush1.msra.mxu0 0.0
    %224 = vmatprep.subr.mxu0 0.0
    %225 = vmatpush1.msra.mxu0 0.0
    %226 = vmatprep.subr.mxu0 0.0
    %227 = vmatpush1.msra.mxu0 0.0
    %228 = vmatprep.subr.mxu0 0.0
    %229 = vmatpush1.msra.mxu0 0.0
    %230 = vmatprep.subr.mxu0 0.0
    %231 = vmatpush1.msra.mxu0 0.0
    %232 = vmatprep.subr.mxu0 0.0
    %233 = vmatpush1.msra.mxu0 0.0
    %234 = vmatprep.subr.mxu0 0.0
    %235 = vmatpush1.msra.mxu0 0.0
    %236 = vmatprep.subr.mxu0 0.0
    %237 = vmatpush1.msra.mxu0 0.0
    %238 = vmatprep.subr.mxu0 0.0
    %239 = vmatpush1.msra.mxu0 0.0
    %240 = vmatprep.subr.mxu0 0.0
    %241 = vmatpush1.msra.mxu0 0.0
    %242 = vmatprep.subr.mxu0 0.0
    %243 = vmatpush1.msra.mxu0 0.0
    %244 = vmatprep.subr.mxu0 0.0
    %245 = vmatpush1.msra.mxu0 0.0
    %246 = vmatprep.subr.mxu0 0.0
    %247 = vmatpush1.msra.mxu0 0.0
    %248 = vmatprep.subr.mxu0 0.0
    %249 = vmatpush1.msra.mxu0 0.0
    %250 = vmatprep.subr.mxu0 0.0
    %251 = vmatpush1.msra.mxu0 0.0
    %252 = vmatprep.subr.mxu0 0.0
    %253 = vmatpush1.msra.mxu0 0.0
    %254 = vmatprep.mubr.f32.mxu0 0.0
    %255 = vmatmul.mubr.f32.gmra.mrb[0].mxu0 %v166
    %v256 = vpop.f32.mrb[0].mxu0
    %v257 = vadd.f32 %v188, %v256
    %v258 = vpop.f32.mrb[0].mxu0
    %259 = vdwg.mxu0
    %v260 = vmax.f32 %v257, 0.0
    %v261 = vld [vmem:[#allocation8] sm:$0xff]
    %v262 = vld [vmem:[#allocation8 + $0x8] sm:$0xff]
    %v263 = vld [vmem:[#allocation8 + $0x10] sm:$0xff]
    %v264 = vld [vmem:[#allocation8 + $0x18] sm:$0xff]
    %v265 = vld [vmem:[#allocation8 + $0x20] sm:$0xff]
    %v266 = vld [vmem:[#allocation8 + $0x28] sm:$0xff]
    %v267 = vld [vmem:[#allocation8 + $0x30] sm:$0xff]
    %v268 = vld [vmem:[#allocation8 + $0x38] sm:$0xff]
    %v269 = vld [vmem:[#allocation8 + $0x40] sm:$0xff]
    %v270 = vld [vmem:[#allocation8 + $0x48] sm:$0xff]
    %v271 = vld [vmem:[#allocation8 + $0x50] sm:$0xff]
    %v272 = vld [vmem:[#allocation8 + $0x58] sm:$0xff]
    %v273 = vld [vmem:[#allocation8 + $0x60] sm:$0xff]
    %v274 = vld [vmem:[#allocation8 + $0x68] sm:$0xff]
    %v275 = vld [vmem:[#allocation8 + $0x70] sm:$0xff]
    %v276 = vld [vmem:[#allocation8 + $0x78] sm:$0xff]
    %v277 = vld [vmem:[%s6] sm:$0x1]
    %v279 = vlaneseq
    %v280 = vshrl.u32 %v279, 7
    %v281 = vsub.s32 0, %v280
    %v282 = vrot.slane %v277, %v281
    %284 = vmatprep.subr.mxu0 0.0
    %285 = vmatpush1.msra.mxu0 %v261
    %286 = vmatprep.subr.mxu0 0.0
    %287 = vmatpush1.msra.mxu0 %v262
    %288 = vmatprep.subr.mxu0 0.0
    %289 = vmatpush1.msra.mxu0 %v263
    %290 = vmatprep.subr.mxu0 0.0
    %291 = vmatpush1.msra.mxu0 %v264
    %292 = vmatprep.subr.mxu0 0.0
    %293 = vmatpush1.msra.mxu0 %v265
    %294 = vmatprep.subr.mxu0 0.0
    %295 = vmatpush1.msra.mxu0 %v266
    %296 = vmatprep.subr.mxu0 0.0
    %297 = vmatpush1.msra.mxu0 %v267
    %298 = vmatprep.subr.mxu0 0.0
    %299 = vmatpush1.msra.mxu0 %v268
    %300 = vmatprep.subr.mxu0 0.0
    %301 = vmatpush1.msra.mxu0 %v269
    %302 = vmatprep.subr.mxu0 0.0
    %303 = vmatpush1.msra.mxu0 %v270
    %304 = vmatprep.subr.mxu0 0.0
    %305 = vmatpush1.msra.mxu0 %v271
    %306 = vmatprep.subr.mxu0 0.0
    %307 = vmatpush1.msra.mxu0 %v272
    %308 = vmatprep.subr.mxu0 0.0
    %309 = vmatpush1.msra.mxu0 %v273
    %310 = vmatprep.subr.mxu0 0.0
    %311 = vmatpush1.msra.mxu0 %v274
    %312 = vmatprep.subr.mxu0 0.0
    %313 = vmatpush1.msra.mxu0 %v275
    %314 = vmatprep.subr.mxu0 0.0
    %315 = vmatpush1.msra.mxu0 %v276
    %316 = vmatprep.subr.mxu0 0.0
    %317 = vmatpush1.msra.mxu0 0.0
    %318 = vmatprep.subr.mxu0 0.0
    %319 = vmatpush1.msra.mxu0 0.0
    %320 = vmatprep.subr.mxu0 0.0
    %321 = vmatpush1.msra.mxu0 0.0
    %322 = vmatprep.subr.mxu0 0.0
    %323 = vmatpush1.msra.mxu0 0.0
    %324 = vmatprep.subr.mxu0 0.0
    %325 = vmatpush1.msra.mxu0 0.0
    %326 = vmatprep.subr.mxu0 0.0
    %327 = vmatpush1.msra.mxu0 0.0
    %328 = vmatprep.subr.mxu0 0.0
    %329 = vmatpush1.msra.mxu0 0.0
    %330 = vmatprep.subr.mxu0 0.0
    %331 = vmatpush1.msra.mxu0 0.0
    %332 = vmatprep.subr.mxu0 0.0
    %333 = vmatpush1.msra.mxu0 0.0
    %334 = vmatprep.subr.mxu0 0.0
    %335 = vmatpush1.msra.mxu0 0.0
    %336 = vmatprep.subr.mxu0 0.0
    %337 = vmatpush1.msra.mxu0 0.0
    %338 = vmatprep.subr.mxu0 0.0
    %339 = vmatpush1.msra.mxu0 0.0
    %340 = vmatprep.subr.mxu0 0.0
    %341 = vmatpush1.msra.mxu0 0.0
    %342 = vmatprep.subr.mxu0 0.0
    %343 = vmatpush1.msra.mxu0 0.0
    %344 = vmatprep.subr.mxu0 0.0
    %345 = vmatpush1.msra.mxu0 0.0
    %346 = vmatprep.subr.mxu0 0.0
    %347 = vmatpush1.msra.mxu0 0.0
    %348 = vmatprep.mubr.f32.mxu0 0.0
    %349 = vmatmul.mubr.f32.gmra.mrb[0].mxu0 %v260
    %v350 = vpop.f32.mrb[0].mxu0
    %v351 = vadd.f32 %v282, %v350
    %v352 = vpop.f32.mrb[0].mxu0
    %353 = vdwg.mxu0
    %354 = vst [vmem:[#allocation10] sm:$0xff] %v351
    // Predicated region
    $region46: #{tpu_custom_call.1} parent=1 // pred_check
      _
    $region47: #{tpu_custom_call.1} parent=1 // pred_check_branch
      %356 = sbr.rel (0) target = $region49
    $region48: #{tpu_custom_call.1} parent=1 // pred_region
      %s358 = ssub.s32 128, 128
      %359 = vsyncadd [#allocation4], %s358
      %s361 = sshll.u32 [#allocation10], 4
      %s362 = int_to_ptr.vmem [resolvable:$true] %s361
      %364 = dma.vmem_to_hbm [thread:$0]  %s362, 128, %s7, [#allocation4]
    $region49: #{tpu_custom_call.1} parent=1 // pred_fallthru
      _
    // Predicated region
    $region50: #{tpu_custom_call.1} parent=1 // pred_check
      _
    $region51: #{tpu_custom_call.1} parent=1 // pred_check_branch
      %366 = sbr.rel (0) target = $region53
    $region52: #{tpu_custom_call.1} parent=1 // pred_region
      %367 = dma.done [#allocation4], 128
    $region53: #{tpu_custom_call.1} parent=1 // pred_fallthru
      _
    %368 = vsyncpa [#allocation3], 1
    %369 = vsyncpa [#allocation6], 1
    %370 = vsyncpa [#allocation9], 1
    %371 = vsyncpa [#allocation4], 1

</llo_original>
